<compile_context>
chip_gen: v5e
topology: v5e:2x2
jax: 0.10.0
libtpu: 0.0.40
codegen_flags: <defaults>
</compile_context>

<pallas_src>
import jax
import jax.numpy as jnp
from jax.experimental import pallas as pl
from jax.experimental.pallas import tpu as pltpu

EPS = 1e-5  # torch.nn.GroupNorm default

# Explicit scoped-VMEM limit: above v5e's 16 MiB default, equal to the
# v6e/v7x 32 MiB default, comfortably under every generation's physical VMEM.
_VMEM_LIMIT_BYTES = 32 * 1024 * 1024
# Conservative tile/fused-path sizing budget (leaves headroom for
# double-buffering and compiler temporaries on v7x's 64 MiB VMEM).
_BUDGET_BYTES = 12 * 1024 * 1024


def _round_up(v, m):
    return (v + m - 1) // m * m


# --------------------------------------------------------------------------
# Fused single-pass kernel: one whole sample (C, HW) resident per grid step.
# --------------------------------------------------------------------------
def _prenorm_fused_kernel(x_ref, gamma_ref, beta_ref, w_ref, bias_ref, o_ref):
    x = x_ref[...].astype(jnp.float32)                        # (C, HW) f32
    n = x.shape[0] * x.shape[1]
    # GroupNorm(1): stats over all of (C, HW).  Two-step variance (subtract
    # mean before squaring) -- numerically stable, cheap since x is resident.
    mean = jnp.sum(x, axis=(0, 1), keepdims=True) / n          # (1, 1)
    xc = x - mean
    var = jnp.sum(xc * xc, axis=(0, 1), keepdims=True) / n     # biased (torch)
    rstd = jax.lax.rsqrt(var + EPS)
    x_norm = xc * (gamma_ref[...] * rstd) + beta_ref[...]      # (C, HW) f32
    # fn == 1x1 conv over channels: bf16 MXU operands, f32 accumulation.
    y = jnp.dot(w_ref[...], x_norm.astype(jnp.bfloat16),
                preferred_element_type=jnp.float32)            # (C, HW) f32
    o_ref[...] = (y + bias_ref[...] + x).astype(o_ref.dtype)


# --------------------------------------------------------------------------
# Tiled kernel: GroupNorm affine/rstd already folded into per-sample W_b, b_b.
#   out = W_b @ x + b_b + x   (lane-dense (C, TILE_HW) tiles)
# --------------------------------------------------------------------------
def _prenorm_tiled_kernel(x_ref, wb_ref, bb_ref, o_ref):
    x = x_ref[...]                                             # (C, T) in dtype
    y = jnp.dot(wb_ref[...], x.astype(jnp.bfloat16),
                preferred_element_type=jnp.float32)            # (C, T) f32
    o_ref[...] = (y + bb_ref[...] + x.astype(jnp.float32)).astype(o_ref.dtype)


def _pick_tile_hw(C, hw, in_itemsize, out_itemsize):
    """Near-equal, multiple-of-128 HW tiles under the VMEM budget."""
    # Bytes per HW lane per grid step: double-buffered in + out tiles, plus
    # ~3 (C, T) body temporaries (x_bf16, y_f32, x_f32 residual).
    per_lane = C * (2 * in_itemsize + 2 * out_itemsize + 12)
    t_max = max(128, (_BUDGET_BYTES // per_lane) // 128 * 128)
    if t_max >= hw:
        return hw                     # single block == full dim (always legal)
    n_tiles = -(-hw // t_max)         # cdiv
    return _round_up(-(-hw // n_tiles), 128)


def prenorm(x, gamma, beta, w, bias, *, force_path=None, tile_hw=None):
    """PreNorm forward: fn(GroupNorm(1, C)(x)) + x, fn = 1x1 Conv2d(C, C).

    x: (B, C, H, W) NCHW.  gamma/beta/bias: (C,).  w: (C, C)."""
    B, C, H, W = x.shape
    HW = H * W
    x2 = x.reshape(B, C, HW)
    out_dtype = x.dtype
    in_item = jnp.dtype(x.dtype).itemsize
    out_item = jnp.dtype(out_dtype).itemsize

    # ---- Fused single-pass path: whole (C, HW) sample resident in VMEM. ----
    # Footprint/elem: double-buffered in + out tiles + ~4 f32 temps + bf16 copy.
    fused_bytes = C * HW * (2 * in_item + 2 * out_item + 4 * 4 + 2)
    use_fused = fused_bytes <= _BUDGET_BYTES
    if force_path == "fused":
        use_fused = True
    elif force_path == "tiled":
        use_fused = False

    if use_fused:
        out = pl.pallas_call(
            _prenorm_fused_kernel,
            out_shape=jax.ShapeDtypeStruct((B, C, HW), out_dtype),
            grid_spec=pltpu.PrefetchScalarGridSpec(
                num_scalar_prefetch=0,
                grid=(B,),
                in_specs=[
                    pl.BlockSpec((None, C, HW), lambda b: (b, 0, 0)),
                    pl.BlockSpec((C, 1), lambda b: (0, 0)),
                    pl.BlockSpec((C, 1), lambda b: (0, 0)),
                    pl.BlockSpec((C, C), lambda b: (0, 0)),
                    pl.BlockSpec((C, 1), lambda b: (0, 0)),
                ],
                out_specs=pl.BlockSpec((None, C, HW), lambda b: (b, 0, 0)),
            ),
            compiler_params=pltpu.CompilerParams(
                dimension_semantics=("parallel",),
                vmem_limit_bytes=_VMEM_LIMIT_BYTES),
        )(
            x2,
            gamma.astype(jnp.float32).reshape(C, 1),
            beta.astype(jnp.float32).reshape(C, 1),
            w.astype(jnp.bfloat16),
            bias.astype(jnp.float32).reshape(C, 1),
        )
        return out.reshape(B, C, H, W)

    # ---- Tiled two-pass path (sample too large to keep resident). ----
    # Pass 1: per-sample stats in XLA.  Both moments come from one pass over x
    # (XLA multi-output fusion); a coarse per-sample shift is subtracted before
    # squaring to avoid catastrophic cancellation in E[x^2] - E[x]^2.
    xf = x2.astype(jnp.float32)
    n = C * HW
    c0 = xf[:, :1, :1]                                   # (B, 1, 1) coarse shift
    d = xf - c0
    s1 = jnp.sum(d, axis=(1, 2))
    s2 = jnp.sum(d * d, axis=(1, 2))
    mean_d = s1 / n
    var = jnp.maximum(s2 / n - mean_d * mean_d, 0.0)     # biased variance (torch)
    mean = c0[:, 0, 0] + mean_d
    rstd = jax.lax.rsqrt(var + EPS)

    # Fold GroupNorm affine + stats into per-sample conv weight / bias:
    #   W @ (x*scale + shift) + bias + x == (W*scale) @ x + (W@shift + bias) + x
    scale = gamma[None, :].astype(jnp.float32) * rstd[:, None]          # (B, C)
    shift = beta[None, :].astype(jnp.float32) - mean[:, None] * scale   # (B, C)
    wf = w.astype(jnp.float32)
    wb = (wf[None, :, :] * scale[:, None, :]).astype(jnp.bfloat16)      # (B, C, C)
    bb = (jnp.einsum("oc,bc->bo", wf, shift)
          + bias.astype(jnp.float32)[None, :])[:, :, None]              # (B, C, 1)

    # Pass 2: Pallas over lane-dense (C, TILE_HW) tiles.  No padding / slicing:
    # the HW grid is ragged and OOB stores of the last tile are masked.
    tile = tile_hw if tile_hw is not None else _pick_tile_hw(C, HW, in_item, out_item)
    n_hw = pl.cdiv(HW, tile)

    out = pl.pallas_call(
        _prenorm_tiled_kernel,
        out_shape=jax.ShapeDtypeStruct((B, C, HW), out_dtype),
        grid_spec=pltpu.PrefetchScalarGridSpec(
            num_scalar_prefetch=0,
            # Large HW axis first so the v7x megacore split lands on it even
            # for tiny batches.
            grid=(n_hw, B),
            in_specs=[
                pl.BlockSpec((None, C, tile), lambda t, b: (b, 0, t)),
                pl.BlockSpec((None, C, C), lambda t, b: (b, 0, 0)),
                pl.BlockSpec((None, C, 1), lambda t, b: (b, 0, 0)),
            ],
            out_specs=pl.BlockSpec((None, C, tile), lambda t, b: (b, 0, t)),
        ),
        compiler_params=pltpu.CompilerParams(
            dimension_semantics=("parallel", "parallel"),
            vmem_limit_bytes=_VMEM_LIMIT_BYTES),
    )(x2, wb, bb)
    return out.reshape(B, C, H, W)


def prenorm_ref(x, gamma, beta, w, bias):
    """Pure-f32 JAX reference of PreNorm with fn = 1x1 Conv2d(C, C)."""
    B, C, H, W = x.shape
    xf = x.astype(jnp.float32).reshape(B, -1)
    mean = xf.mean(axis=1)
    var = ((xf - mean[:, None]) ** 2).mean(axis=1)
    rstd = jax.lax.rsqrt(var + EPS)
    xn = (x.astype(jnp.float32) - mean[:, None, None, None]) * rstd[:, None, None, None]
    xn = xn * gamma.reshape(1, C, 1, 1) + beta.reshape(1, C, 1, 1)
    y = jnp.einsum("oc,bchw->bohw", w.astype(jnp.float32), xn,
                   preferred_element_type=jnp.float32)
    y = y + bias.reshape(1, C, 1, 1)
    return (y + x.astype(jnp.float32)).astype(x.dtype)


if __name__ == "__main__":
    key = jax.random.PRNGKey(0)
    kx, kg, kb, kw, kbi, kx2 = jax.random.split(key, 6)

    # ---- Primary test: small NCHW input -> fused single-pass path. ----
    B, C, H, W = 2, 4, 16, 16
    x = jax.random.normal(kx, (B, C, H, W), dtype=jnp.float32)
    gamma = 1.0 + 0.1 * jax.random.normal(kg, (C,), dtype=jnp.float32)
    beta = 0.1 * jax.random.normal(kb, (C,), dtype=jnp.float32)
    w = jax.random.normal(kw, (C, C), dtype=jnp.float32) * (1.0 / jnp.sqrt(C))
    bias = 0.1 * jax.random.normal(kbi, (C,), dtype=jnp.float32)

    out = jax.block_until_ready(prenorm(x, gamma, beta, w, bias))
    ref = prenorm_ref(x, gamma, beta, w, bias)
    assert out.shape == (B, C, H, W)
    # Kernel uses bf16 MXU operands with f32 accumulation vs a pure-f32 ref.
    assert jnp.allclose(out, ref, atol=3e-2, rtol=3e-2), "fused path mismatch"

    # ---- Secondary test: force the tiled path with a ragged last HW tile. ----
    B2, C2, H2, W2 = 2, 8, 16, 18      # HW = 288 -> tiles of 128, last is ragged
    x_b = jax.random.normal(kx2, (B2, C2, H2, W2), dtype=jnp.float32)
    gamma2 = 1.0 + 0.1 * jax.random.normal(kg, (C2,), dtype=jnp.float32)
    beta2 = 0.1 * jax.random.normal(kb, (C2,), dtype=jnp.float32)
    w2 = jax.random.normal(kw, (C2, C2), dtype=jnp.float32) * (1.0 / jnp.sqrt(C2))
    bias2 = 0.1 * jax.random.normal(kbi, (C2,), dtype=jnp.float32)

    out2 = jax.block_until_ready(
        prenorm(x_b, gamma2, beta2, w2, bias2, force_path="tiled", tile_hw=128))
    ref2 = prenorm_ref(x_b, gamma2, beta2, w2, bias2)
    assert out2.shape == (B2, C2, H2, W2)
    assert jnp.allclose(out2, ref2, atol=3e-2, rtol=3e-2), "tiled path mismatch"

    print("KERNEL_OK")
</pallas_src>

<mosaic_0001>
module attributes {stable_mosaic.version = 11 : i64} {
  func.func @_prenorm_fused_kernel(%arg0: i32, %arg1: memref<1x4x256xf32, #tpu.memory_space<vmem>>, %arg2: memref<4x1xf32, #tpu.memory_space<vmem>>, %arg3: memref<4x1xf32, #tpu.memory_space<vmem>>, %arg4: memref<4x4xbf16, #tpu.memory_space<vmem>>, %arg5: memref<4x1xf32, #tpu.memory_space<vmem>>, %arg6: memref<1x4x256xf32, #tpu.memory_space<vmem>>) attributes {dimension_semantics = [#tpu.dimension_semantics<parallel>], iteration_bounds = array<i64: 2>, scalar_prefetch = 0 : i64, scratch_operands = 0 : i64, tpu.core_type = #tpu.core_type<tc>, window_params = [{transform_indices = @transform_0, window_bounds = array<i64: 1, 4, 256>}, {pipeline_mode = #tpu.pipeline_mode<synchronous>, transform_indices = @transform_1, window_bounds = array<i64: 4, 1>}, {pipeline_mode = #tpu.pipeline_mode<synchronous>, transform_indices = @transform_2, window_bounds = array<i64: 4, 1>}, {pipeline_mode = #tpu.pipeline_mode<synchronous>, transform_indices = @transform_3, window_bounds = array<i64: 4, 4>}, {pipeline_mode = #tpu.pipeline_mode<synchronous>, transform_indices = @transform_4, window_bounds = array<i64: 4, 1>}, {transform_indices = @transform_5, window_bounds = array<i64: 1, 4, 256>}]} {
    %c0 = arith.constant 0 : index
    %c0_0 = arith.constant 0 : index
    %c0_1 = arith.constant 0 : index
    %0 = vector.load %arg1[%c0, %c0_0, %c0_1] : memref<1x4x256xf32, #tpu.memory_space<vmem>>, vector<1x4x256xf32>
    %1 = vector.shape_cast %0 : vector<1x4x256xf32> to vector<4x256xf32>
    %2 = vector.shape_cast %1 : vector<4x256xf32> to vector<1x4x256xf32>
    %cst = arith.constant dense<0.000000e+00> : vector<1xf32>
    %3 = vector.multi_reduction <add>, %2, %cst [1, 2] : vector<1x4x256xf32> to vector<1xf32>
    %4 = vector.shape_cast %3 : vector<1xf32> to vector<1x1x1xf32>
    %5 = vector.extract %4[0, 0, 0] : f32 from vector<1x1x1xf32>
    %6 = vector.broadcast %5 : f32 to vector<1x1xf32>
    %cst_2 = arith.constant 1.024000e+03 : f32
    %7 = vector.broadcast %cst_2 : f32 to vector<1x1xf32>
    %8 = arith.divf %6, %7 : vector<1x1xf32>
    %9 = vector.broadcast %8 : vector<1x1xf32> to vector<4x256xf32>
    %10 = arith.subf %1, %9 : vector<4x256xf32>
    %11 = arith.mulf %10, %10 : vector<4x256xf32>
    %12 = vector.shape_cast %11 : vector<4x256xf32> to vector<1x4x256xf32>
    %cst_3 = arith.constant dense<0.000000e+00> : vector<1xf32>
    %13 = vector.multi_reduction <add>, %12, %cst_3 [1, 2] : vector<1x4x256xf32> to vector<1xf32>
    %14 = vector.shape_cast %13 : vector<1xf32> to vector<1x1x1xf32>
    %15 = vector.extract %14[0, 0, 0] : f32 from vector<1x1x1xf32>
    %16 = vector.broadcast %15 : f32 to vector<1x1xf32>
    %cst_4 = arith.constant 1.024000e+03 : f32
    %17 = vector.broadcast %cst_4 : f32 to vector<1x1xf32>
    %18 = arith.divf %16, %17 : vector<1x1xf32>
    %cst_5 = arith.constant 9.99999974E-6 : f32
    %19 = vector.broadcast %cst_5 : f32 to vector<1x1xf32>
    %20 = arith.addf %18, %19 : vector<1x1xf32>
    %21 = math.rsqrt %20 : vector<1x1xf32>
    %c0_6 = arith.constant 0 : index
    %c0_7 = arith.constant 0 : index
    %22 = vector.load %arg2[%c0_6, %c0_7] : memref<4x1xf32, #tpu.memory_space<vmem>>, vector<4x1xf32>
    %23 = vector.broadcast %21 : vector<1x1xf32> to vector<4x1xf32>
    %24 = arith.mulf %22, %23 : vector<4x1xf32>
    %25 = vector.broadcast %24 : vector<4x1xf32> to vector<4x256xf32>
    %26 = arith.mulf %10, %25 : vector<4x256xf32>
    %c0_8 = arith.constant 0 : index
    %c0_9 = arith.constant 0 : index
    %27 = vector.load %arg3[%c0_8, %c0_9] : memref<4x1xf32, #tpu.memory_space<vmem>>, vector<4x1xf32>
    %28 = vector.broadcast %27 : vector<4x1xf32> to vector<4x256xf32>
    %29 = arith.addf %26, %28 : vector<4x256xf32>
    %c0_10 = arith.constant 0 : index
    %c0_11 = arith.constant 0 : index
    %30 = vector.load %arg4[%c0_10, %c0_11] : memref<4x4xbf16, #tpu.memory_space<vmem>>, vector<4x4xbf16>
    %31 = arith.truncf %29 : vector<4x256xf32> to vector<4x256xbf16>
    %cst_12 = arith.constant dense<0.000000e+00> : vector<4x256xf32>
    %32 = tpu.matmul %30, %31, %cst_12 {dimension_numbers = #tpu.dot_dimension_numbers<[1], [0], [0], [1], [0, 0, 1, 1], [], []>} : vector<4x4xbf16>, vector<4x256xbf16>, vector<4x256xf32> -> vector<4x256xf32>
    %c0_13 = arith.constant 0 : index
    %c0_14 = arith.constant 0 : index
    %33 = vector.load %arg5[%c0_13, %c0_14] : memref<4x1xf32, #tpu.memory_space<vmem>>, vector<4x1xf32>
    %34 = vector.broadcast %33 : vector<4x1xf32> to vector<4x256xf32>
    %35 = arith.addf %32, %34 : vector<4x256xf32>
    %36 = arith.addf %35, %1 : vector<4x256xf32>
    %c0_15 = arith.constant 0 : index
    %c0_16 = arith.constant 0 : index
    %c0_17 = arith.constant 0 : index
    %37 = vector.load %arg6[%c0_15, %c0_16, %c0_17] : memref<1x4x256xf32, #tpu.memory_space<vmem>>, vector<1x4x256xf32>
    %38 = vector.shape_cast %37 : vector<1x4x256xf32> to vector<4x256xf32>
    %39 = vector.shape_cast %36 : vector<4x256xf32> to vector<1x4x256xf32>
    tpu.vector_store %arg6[%c0_15, %c0_16, %c0_17], %39 {strides = array<i32>} : memref<1x4x256xf32, #tpu.memory_space<vmem>>, vector<1x4x256xf32>,
    return
  }
  func.func @transform_0(%arg0: i32) -> (i32, i32, i32) {
    %c0_i32 = arith.constant 0 : i32
    %c0_i32_0 = arith.constant 0 : i32
    %c0_i32_1 = arith.constant 0 : i32
    return %arg0, %c0_i32, %c0_i32_0 : i32, i32, i32
  }
  func.func @transform_1(%arg0: i32) -> (i32, i32) {
    %c0_i32 = arith.constant 0 : i32
    %c0_i32_0 = arith.constant 0 : i32
    %c0_i32_1 = arith.constant 0 : i32
    return %c0_i32, %c0_i32_0 : i32, i32
  }
  func.func @transform_2(%arg0: i32) -> (i32, i32) {
    %c0_i32 = arith.constant 0 : i32
    %c0_i32_0 = arith.constant 0 : i32
    %c0_i32_1 = arith.constant 0 : i32
    return %c0_i32, %c0_i32_0 : i32, i32
  }
  func.func @transform_3(%arg0: i32) -> (i32, i32) {
    %c0_i32 = arith.constant 0 : i32
    %c0_i32_0 = arith.constant 0 : i32
    %c0_i32_1 = arith.constant 0 : i32
    return %c0_i32, %c0_i32_0 : i32, i32
  }
  func.func @transform_4(%arg0: i32) -> (i32, i32) {
    %c0_i32 = arith.constant 0 : i32
    %c0_i32_0 = arith.constant 0 : i32
    %c0_i32_1 = arith.constant 0 : i32
    return %c0_i32, %c0_i32_0 : i32, i32
  }
  func.func @transform_5(%arg0: i32) -> (i32, i32, i32) {
    %c0_i32 = arith.constant 0 : i32
    %c0_i32_0 = arith.constant 0 : i32
    %c0_i32_1 = arith.constant 0 : i32
    return %arg0, %c0_i32, %c0_i32_0 : i32, i32, i32
  }
}

</mosaic_0001>

<llo_original>
// kernel: tpu_custom_call.1
$region0: #{tpu_custom_call.1}
  #allocation0 [shape = 'u32[]', space=smem, size = 0x4, offset = 0x4, fixed_abs, tag = 'smem constant byte address 0x4 - core index']
  #allocation1 [shape = 'u32[72,128]{1,0:T(1,128)}', space=vmem, size = 0x9000, scoped, tag = 'internal scratch']
  %s0 = inlined_call_operand.hbm [shape: f32[2,4,256], index: 0, kind: input, shape index: {}]
  %s1 = inlined_call_operand.vmem [shape: f32[4,1], index: 1, kind: input, shape index: {}]
  %s2 = inlined_call_operand.vmem [shape: f32[4,1], index: 2, kind: input, shape index: {}]
  %s3 = inlined_call_operand.vmem [shape: bf16[4,4], index: 3, kind: input, shape index: {}]
  %s4 = inlined_call_operand.vmem [shape: f32[4,1], index: 4, kind: input, shape index: {}]
  %s5 = inlined_call_operand.hbm [shape: f32[2,4,256], index: 5, kind: output, shape index: {}]
  %s6 = sld [smem:[#allocation0]]
  $region57: #{tpu_custom_call.1} parent=0
    _
  %s8 = ssub.s32 1, %s6
  %s9 = scalar_select 0, %s8, %s6
  $region1: #{tpu_custom_call.1} parent=0
    #allocation2 [shape = 'u8[8192]{0}', space=vmem, size = 0x2000, scoped, tag = 'input window, operand 0']
    #allocation3 [shape = 's32[2]{0}', space=sflag, size = 0x8, scoped, tag = 'scoped memory for tpu_custom_call.1']
    #allocation4 [shape = 's32[2]{0}', space=sflag, size = 0x8, scoped, tag = 'scoped memory for tpu_custom_call.1']
    #allocation5 [shape = 'u8[8192]{0}', space=vmem, size = 0x2000, scoped, tag = 'output window, operand 0']
    %10 = vsyncpa [#allocation3], 0
    %s11 = scalar_lea.sflag [#allocation3], 1
    %12 = vsyncpa %s11, 0
    %13 = vsyncpa [#allocation4], 0
    %s14 = scalar_lea.sflag [#allocation4], 1
    %15 = vsyncpa %s14, 0
    loop: start=0, step=1, limit=4
    $region2: #{tpu_custom_call.1} parent=1 // loop_pre_header
      _
    $region3: #{tpu_custom_call.1} parent=1 // loop_header
      %s17 = sphi 0, %s21
      %p18 = scmp.ge.s32.totalorder %s17, 4
      %s27 = sphi 0, %s29
      %s30 = sphi 0, %s27
      %s31 = sphi 0, %s30
      %s47 = sphi 0, %s31
      %s51 = sphi 0, %s51
      %s53 = sphi 0, %s51
      %s54 = sphi 0, %s53
      %s68 = sphi 0, %s54
      %s72 = sphi 0, %s72
      %s74 = sphi 0, %s72
      %s75 = sphi 0, %s74
      %s89 = sphi 0, %s75
      %s93 = sphi 0, %s93
      %s95 = sphi 0, %s93
      %s96 = sphi 0, %s95
      %s110 = sphi 0, %s96
      %s114 = sphi 0, %s114
      %s116 = sphi 0, %s114
      %s117 = sphi 0, %s116
      %s131 = sphi 0, %s117
      %s137 = sphi 0, %s139
      %s140 = sphi 0, %s137
      %s141 = sphi 0, %s140
      %s157 = sphi 0, %s141
    $region4: #{tpu_custom_call.1} parent=1 // loop_header_branch
      %20 = sbr.rel (%p18) target = $region8
    $region5: #{tpu_custom_call.1} parent=1 // loop_body
      %s22 = ssub.s32 %s17, 1
      %s23 = ssub.s32 %s17, 2
      %s24 = sadd.s32 %s17, 1
      %s25 = ssub.s32 %s17, %s24
      %p26 = scmp.eq.s32.totalorder %s25, 0
      %s28 = sadd.s32 %s27, 1
      %s29 = scalar_select %p26, %s27, %s28
      %p32 = pneg %p26
      %p33 = scmp.eq.s32.totalorder %s17, 1
      %p34 = por %p32, %p33
      %p35 = scmp.ne.s32.totalorder %s27, %s30
      %p36 = scmp.eq.s32.totalorder %s17, 0
      %p37 = por %p35, %p36
      %p38 = scmp.ne.s32.totalorder %s27, %s30
      %p39 = scmp.eq.s32.totalorder %s22, 1
      %p40 = por %p38, %p39
      %p41 = scmp.ne.s32.totalorder %s30, %s31
      %p42 = scmp.eq.s32.totalorder %s22, 0
      %p43 = por %p41, %p42
      %p44 = scmp.ne.s32.totalorder %s30, %s31
      %p45 = scmp.eq.s32.totalorder %s23, 1
      %p46 = por %p44, %p45
      %p48 = scmp.ne.s32.totalorder %s31, %s47
      %p49 = scmp.eq.s32.totalorder %s23, 0
      %p50 = por %p48, %p49
      %s52 = sadd.s32 %s51, 1
      %p55 = scmp.eq.s32.totalorder %s17, 1
      %p56 = scmp.ne.s32.totalorder %s51, %s53
      %p57 = scmp.eq.s32.totalorder %s17, 0
      %p58 = por %p56, %p57
      %p59 = scmp.ne.s32.totalorder %s51, %s53
      %p60 = scmp.eq.s32.totalorder %s22, 1
      %p61 = por %p59, %p60
      %p62 = scmp.ne.s32.totalorder %s53, %s54
      %p63 = scmp.eq.s32.totalorder %s22, 0
      %p64 = por %p62, %p63
      %p65 = scmp.ne.s32.totalorder %s53, %s54
      %p66 = scmp.eq.s32.totalorder %s23, 1
      %p67 = por %p65, %p66
      %p69 = scmp.ne.s32.totalorder %s54, %s68
      %p70 = scmp.eq.s32.totalorder %s23, 0
      %p71 = por %p69, %p70
      %s73 = sadd.s32 %s72, 1
      %p76 = scmp.eq.s32.totalorder %s17, 1
      %p77 = scmp.ne.s32.totalorder %s72, %s74
      %p78 = scmp.eq.s32.totalorder %s17, 0
      %p79 = por %p77, %p78
      %p80 = scmp.ne.s32.totalorder %s72, %s74
      %p81 = scmp.eq.s32.totalorder %s22, 1
      %p82 = por %p80, %p81
      %p83 = scmp.ne.s32.totalorder %s74, %s75
      %p84 = scmp.eq.s32.totalorder %s22, 0
      %p85 = por %p83, %p84
      %p86 = scmp.ne.s32.totalorder %s74, %s75
      %p87 = scmp.eq.s32.totalorder %s23, 1
      %p88 = por %p86, %p87
      %p90 = scmp.ne.s32.totalorder %s75, %s89
      %p91 = scmp.eq.s32.totalorder %s23, 0
      %p92 = por %p90, %p91
      %s94 = sadd.s32 %s93, 1
      %p97 = scmp.eq.s32.totalorder %s17, 1
      %p98 = scmp.ne.s32.totalorder %s93, %s95
      %p99 = scmp.eq.s32.totalorder %s17, 0
      %p100 = por %p98, %p99
      %p101 = scmp.ne.s32.totalorder %s93, %s95
      %p102 = scmp.eq.s32.totalorder %s22, 1
      %p103 = por %p101, %p102
      %p104 = scmp.ne.s32.totalorder %s95, %s96
      %p105 = scmp.eq.s32.totalorder %s22, 0
      %p106 = por %p104, %p105
      %p107 = scmp.ne.s32.totalorder %s95, %s96
      %p108 = scmp.eq.s32.totalorder %s23, 1
      %p109 = por %p107, %p108
      %p111 = scmp.ne.s32.totalorder %s96, %s110
      %p112 = scmp.eq.s32.totalorder %s23, 0
      %p113 = por %p111, %p112
      %s115 = sadd.s32 %s114, 1
      %p118 = scmp.eq.s32.totalorder %s17, 1
      %p119 = scmp.ne.s32.totalorder %s114, %s116
      %p120 = scmp.eq.s32.totalorder %s17, 0
      %p121 = por %p119, %p120
      %p122 = scmp.ne.s32.totalorder %s114, %s116
      %p123 = scmp.eq.s32.totalorder %s22, 1
      %p124 = por %p122, %p123
      %p125 = scmp.ne.s32.totalorder %s116, %s117
      %p126 = scmp.eq.s32.totalorder %s22, 0
      %p127 = por %p125, %p126
      %p128 = scmp.ne.s32.totalorder %s116, %s117
      %p129 = scmp.eq.s32.totalorder %s23, 1
      %p130 = por %p128, %p129
      %p132 = scmp.ne.s32.totalorder %s117, %s131
      %p133 = scmp.eq.s32.totalorder %s23, 0
      %p134 = por %p132, %p133
      %s135 = ssub.s32 %s17, %s24
      %p136 = scmp.eq.s32.totalorder %s135, 0
      %s138 = sadd.s32 %s137, 1
      %s139 = scalar_select %p136, %s137, %s138
      %p142 = pneg %p136
      %p143 = scmp.eq.s32.totalorder %s17, 1
      %p144 = por %p142, %p143
      %p145 = scmp.ne.s32.totalorder %s137, %s140
      %p146 = scmp.eq.s32.totalorder %s17, 0
      %p147 = por %p145, %p146
      %p148 = scmp.ne.s32.totalorder %s137, %s140
      %p149 = scmp.eq.s32.totalorder %s22, 1
      %p150 = por %p148, %p149
      %p151 = scmp.ne.s32.totalorder %s140, %s141
      %p152 = scmp.eq.s32.totalorder %s22, 0
      %p153 = por %p151, %p152
      %p154 = scmp.ne.s32.totalorder %s140, %s141
      %p155 = scmp.eq.s32.totalorder %s23, 1
      %p156 = por %p154, %p155
      %p158 = scmp.ne.s32.totalorder %s141, %s157
      %p159 = scmp.eq.s32.totalorder %s23, 0
      %p160 = por %p158, %p159
      %p161 = scmp.le.s32.totalorder 1, %s17
      %p162 = scmp.lt.s32.totalorder %s17, 3
      %p163 = pnand %p161, %p162
      %p164 = pneg %p163
      // Predicated region
      $region9: #{tpu_custom_call.1} parent=5 // pred_check
        _
      $region10: #{tpu_custom_call.1} parent=5 // pred_check_branch
        %166 = sbr.rel (%p163) target = $region12
      $region11: #{tpu_custom_call.1} parent=5 // pred_region
        %s167 = ssub.s32 %s17, 1
        // Predicated region
        $region13: #{tpu_custom_call.1} parent=11 // pred_check
          %p168 = pneg %p64
        $region14: #{tpu_custom_call.1} parent=11 // pred_check_branch
          %170 = sbr.rel (%p168) target = $region16
        $region15: #{tpu_custom_call.1} parent=11 // pred_region
          _
        $region16: #{tpu_custom_call.1} parent=11 // pred_fallthru
          _
        // Predicated region
        $region17: #{tpu_custom_call.1} parent=11 // pred_check
          %p171 = pneg %p85
        $region18: #{tpu_custom_call.1} parent=11 // pred_check_branch
          %173 = sbr.rel (%p171) target = $region20
        $region19: #{tpu_custom_call.1} parent=11 // pred_region
          _
        $region20: #{tpu_custom_call.1} parent=11 // pred_fallthru
          _
        // Predicated region
        $region21: #{tpu_custom_call.1} parent=11 // pred_check
          %p174 = pneg %p106
        $region22: #{tpu_custom_call.1} parent=11 // pred_check_branch
          %176 = sbr.rel (%p174) target = $region24
        $region23: #{tpu_custom_call.1} parent=11 // pred_region
          _
        $region24: #{tpu_custom_call.1} parent=11 // pred_fallthru
          _
        // Predicated region
        $region25: #{tpu_custom_call.1} parent=11 // pred_check
          %p177 = pneg %p127
        $region26: #{tpu_custom_call.1} parent=11 // pred_check_branch
          %179 = sbr.rel (%p177) target = $region28
        $region27: #{tpu_custom_call.1} parent=11 // pred_region
          _
        $region28: #{tpu_custom_call.1} parent=11 // pred_fallthru
          _
      $region12: #{tpu_custom_call.1} parent=5 // pred_fallthru
        _
      %p180 = scmp.lt.s32.totalorder %s17, 2
      // Predicated region
      $region29: #{tpu_custom_call.1} parent=5 // pred_check
        %p181 = pneg %p180
      $region30: #{tpu_custom_call.1} parent=5 // pred_check_branch
        %183 = sbr.rel (%p181) target = $region32
      $region31: #{tpu_custom_call.1} parent=5 // pred_region
        // Predicated region
        $region33: #{tpu_custom_call.1} parent=31 // pred_check
          %p184 = pneg %p37
        $region34: #{tpu_custom_call.1} parent=31 // pred_check_branch
          %186 = sbr.rel (%p184) target = $region36
        $region35: #{tpu_custom_call.1} parent=31 // pred_region
          %s187 = sand.u32 %s27, 1
          %s188 = scalar_lea.sflag [#allocation3], %s187
          %s189 = sand.u32 %s27, 1
          %s190 = smul.addr %s189, 8
          %s191 = scalar_lea.vmem [#allocation2], %s190
          %193 = vsyncadd %s188, 0
          %s194 = smul.addr %s17, 2
          %s195 = smul.addr %s194, 4
          %s196 = scalar_lea.hbm %s0, %s195
          %s198 = sshll.u32 %s196, 4
          %s199 = int_to_ptr.hbm [resolvable:$true] %s198
          %s200 = sshll.u32 %s191, 4
          %s201 = int_to_ptr.vmem [resolvable:$true] %s200
          %203 = dma.hbm_to_vmem [thread:$0]  %s199, 128, %s201, %s188
        $region36: #{tpu_custom_call.1} parent=31 // pred_fallthru
          _
      $region32: #{tpu_custom_call.1} parent=5 // pred_fallthru
        _
      %p204 = scmp.le.s32.totalorder 1, %s17
      %p205 = scmp.lt.s32.totalorder %s17, 3
      %p206 = pnand %p204, %p205
      %p207 = pneg %p206
      // Predicated region
      $region37: #{tpu_custom_call.1} parent=5 // pred_check
        _
      $region38: #{tpu_custom_call.1} parent=5 // pred_check_branch
        %209 = sbr.rel (%p206) target = $region40
      $region39: #{tpu_custom_call.1} parent=5 // pred_region
        %s210 = ssub.s32 %s17, 1
        %s211 = sand.u32 %s30, 1
        %s212 = scalar_lea.sflag [#allocation3], %s211
        %s213 = sand.u32 %s30, 1
        %s214 = smul.addr %s213, 8
        %s215 = scalar_lea.vmem [#allocation2], %s214
        // Predicated region
        $region41: #{tpu_custom_call.1} parent=39 // pred_check
          %p216 = pneg %p43
        $region42: #{tpu_custom_call.1} parent=39 // pred_check_branch
          %218 = sbr.rel (%p216) target = $region44
        $region43: #{tpu_custom_call.1} parent=39 // pred_region
          %220 = dma.done %s212, 128
        $region44: #{tpu_custom_call.1} parent=39 // pred_fallthru
          _
        %s221 = sand.u32 %s30, 1
        %s222 = scalar_lea.sflag [#allocation3], %s221
        %s223 = sand.u32 %s30, 1
        %s224 = smul.addr %s223, 8
        %s225 = scalar_lea.vmem [#allocation2], %s224
        %p226 = pneg %p43
        %p227 = pneg %p40
        %p228 = pneg %p64
        %p229 = pneg %p61
        %p230 = pneg %p85
        %p231 = pneg %p82
        %p232 = pneg %p106
        %p233 = pneg %p103
        %p234 = pneg %p127
        %p235 = pneg %p124
        %p236 = pneg %p153
        %p237 = pneg %p150
        %s238 = sand.u32 %s140, 1
        %s239 = scalar_lea.sflag [#allocation4], %s238
        %s240 = sand.u32 %s140, 1
        %s241 = smul.addr %s240, 8
        %s242 = scalar_lea.vmem [#allocation5], %s241
        %v244 = vld [vmem:[%s215] sm:$0xff]
        %246 = vst [vmem:[#allocation1] ss:$2 sm:$0xff] %v244
        %v247 = vld.sshfl [vmem:[#allocation1] sm:$0xff pattern:$0x75316420]
        %v248 = vld.sshfl [vmem:[#allocation1 + $0x8] sm:$0xff pattern:$0x75316420]
        %vm251 = vcmask 1043456
        %v252 = vsel %vm251, %v247, 0.0
        %v253 = vsel %vm251, %v248, 0.0
        %v254 = vadd.f32 %v252, %v253
        %255 = vadd.xlane.f32.xlu0 %v254
        %v256 = vpop.xlane.xlu0 %255
        %v257 = vrot.slane %v256, 4
        %v258 = vadd.f32 %v256, %v257
        %v259 = vrot.slane %v258, 2
        %v260 = vadd.f32 %v258, %v259
        %v261 = vrot.slane %v260, 1
        %v262 = vadd.f32 %v260, %v261
        %s263 = vtos %v262
        %v264 = vstv %s263
        %v265 = vrcp.pop 1024.0
        %v266 = vmul.f32 1024.0, %v265
        %v267 = vsub.f32 1.0, %v266
        %v268 = vmul.f32 %v265, %v267
        %v269 = vadd.f32 %v265, %v268
        %vm270 = vweird.f32 %v265
        %v271 = vsel %vm270, %v265, %v269
        %v272 = vmul.f32 %v264, %v271
        %v273 = vsub.f32 %v244, %v272
        %v274 = vmul.f32 %v273, %v273
        %276 = vst [vmem:[#allocation1] ss:$2 sm:$0xff] %v274
        %v277 = vld.sshfl [vmem:[#allocation1] sm:$0xff pattern:$0x75316420]
        %v278 = vld.sshfl [vmem:[#allocation1 + $0x8] sm:$0xff pattern:$0x75316420]
        %v281 = vsel %vm251, %v277, 0.0
        %v282 = vsel %vm251, %v278, 0.0
        %v283 = vadd.f32 %v281, %v282
        %284 = vadd.xlane.f32.xlu0 %v283
        %v285 = vpop.xlane.xlu0 %284
        %v286 = vrot.slane %v285, 4
        %v287 = vadd.f32 %v285, %v286
        %v288 = vrot.slane %v287, 2
        %v289 = vadd.f32 %v287, %v288
        %v290 = vrot.slane %v289, 1
        %v291 = vadd.f32 %v289, %v290
        %s292 = vtos %v291
        %v293 = vstv %s292
        %v294 = vmul.f32 %v293, %v271
        %v295 = vadd.f32 %v294, 1e-05
        %v296 = vrsqrt.pop %v295
        %v297 = vmul.f32 %v296, %v295
        %v298 = vmul.f32 %v297, %v296
        %v299 = vmul.f32 0.5, %v298
        %v300 = vsub.f32 1.5, %v299
        %v301 = vmul.f32 %v296, %v300
        %vm302 = vweird.f32 %v295
        %vm303 = vweird.f32 %v296
        %vm304 = vmor %vm302, %vm303
        %v305 = vsel %vm304, %v296, %v301
        %v306 = vld [vmem:[%s1] sm:$0xf]
        %v307 = vmul.f32 %v306, %v305
        %309 = vset.pattern.permute.xlu0 0
        %310 = vperm.xlu0 %309, %v307
        %v311 = vpop.permute.xlu0 %310
        %v313 = vunpack.c.l.s4 839922192
        %v314 = vunpack.c.0.s8 %v313
        %v315 = vperm.slane %v311, %v314
        %v317 = vmul.f32 %v273, %v315
        %v318 = vld [vmem:[%s2] sm:$0xf]
        %320 = vset.pattern.permute.xlu0 0
        %321 = vperm.xlu0 %320, %v318
        %v322 = vpop.permute.xlu0 %321
        %v324 = vunpack.c.l.s4 839922192
        %v325 = vunpack.c.0.s8 %v324
        %v326 = vperm.slane %v322, %v325
        %v328 = vadd.f32 %v317, %v326
        %v329 = vld [vmem:[%s3] sm:$0x3]
        %331 = vst [vmem:[#allocation1] ss:$2 sm:$0xff] %v328
        %v332 = vld.sshfl [vmem:[#allocation1] sm:$0xff pattern:$0x75316420]
        %v333 = vld.sshfl [vmem:[#allocation1 + $0x8] sm:$0xff pattern:$0x75316420]
        %v336 = vpack.c.bf16 %v332, %v332
        %v337 = vpack.c.bf16 %v333, %v333
        %v338 = vld [vmem:[%s4] sm:$0xf]
        %340 = vset.pattern.permute.xlu0 0
        %341 = vperm.xlu0 %340, %v338
        %v342 = vpop.permute.xlu0 %341
        %vm344 = vcmask 31744
        %v346 = vsel %vm344, %v329, 0
        %vm348 = vcmask 1041408
        %v350 = vsel %vm348, %v336, 0
        %v353 = vsel %vm348, %v337, 0
        %355 = vmatpush.bf16.msra.mxu0 0
        %356 = vmatpush.bf16.msra.mxu0 0
        %357 = vmatpush.bf16.msra.mxu0 0
        %358 = vmatpush.bf16.msra.mxu0 0
        %359 = vmatpush.bf16.msra.mxu0 0
        %360 = vmatpush.bf16.msra.mxu0 0
        %361 = vmatpush.bf16.msra.mxu0 0
        %362 = vmatpush.bf16.msra.mxu0 %v350
        %363 = vmatmul.bf16.gmra.mxu0 %v346
        %v364 = vpop.f32.mrf.mxu0
        %v365 = vadd.f32 %v342, %v364
        %v366 = vpop.f32.mrf.mxu0
        %367 = vdwg.mxu0
        %368 = vmatpush.bf16.msra.mxu0 0
        %369 = vmatpush.bf16.msra.mxu0 0
        %370 = vmatpush.bf16.msra.mxu0 0
        %371 = vmatpush.bf16.msra.mxu0 0
        %372 = vmatpush.bf16.msra.mxu0 0
        %373 = vmatpush.bf16.msra.mxu0 0
        %374 = vmatpush.bf16.msra.mxu0 0
        %375 = vmatpush.bf16.msra.mxu0 %v353
        %376 = vmatmul.bf16.gmra.mxu0 %v346
        %v377 = vpop.f32.mrf.mxu0
        %v378 = vadd.f32 %v342, %v377
        %v379 = vpop.f32.mrf.mxu0
        %380 = vdwg.mxu0
        %381 = vst [vmem:[#allocation1] ss:$2 sm:$0xff] %v244
        %v382 = vld.sshfl [vmem:[#allocation1] sm:$0xff pattern:$0x75316420]
        %v383 = vld.sshfl [vmem:[#allocation1 + $0x8] sm:$0xff pattern:$0x75316420]
        %v386 = vadd.f32 %v365, %v382
        %v387 = vadd.f32 %v378, %v383
        %v390 = vrot.slane %v387, 4
        %v391 = vsel %vm251, %v386, %v390
        %393 = vst [vmem:[%s242] sm:$0xff] %v391
        %s394 = sand.u32 %s140, 1
        %s395 = scalar_lea.sflag [#allocation4], %s394
        %s396 = sand.u32 %s140, 1
        %s397 = smul.addr %s396, 8
        %s398 = scalar_lea.vmem [#allocation5], %s397
        // Predicated region
        $region45: #{tpu_custom_call.1} parent=39 // pred_check
          %p399 = pneg %p150
        $region46: #{tpu_custom_call.1} parent=39 // pred_check_branch
          %401 = sbr.rel (%p399) target = $region48
        $region47: #{tpu_custom_call.1} parent=39 // pred_region
          %403 = vsyncadd %s395, 0
          %s404 = smul.addr %s22, 2
          %s405 = smul.addr %s404, 4
          %s406 = scalar_lea.hbm %s5, %s405
          %s408 = sshll.u32 %s398, 4
          %s409 = int_to_ptr.vmem [resolvable:$true] %s408
          %s410 = sshll.u32 %s406, 4
          %s411 = int_to_ptr.hbm [resolvable:$true] %s410
          %413 = dma.vmem_to_hbm [thread:$0]  %s409, 128, %s411, %s395
        $region48: #{tpu_custom_call.1} parent=39 // pred_fallthru
          _
      $region40: #{tpu_custom_call.1} parent=5 // pred_fallthru
        _
      %p414 = scmp.le.s32.totalorder 2, %s17
      // Predicated region
      $region49: #{tpu_custom_call.1} parent=5 // pred_check
        %p415 = pneg %p414
      $region50: #{tpu_custom_call.1} parent=5 // pred_check_branch
        %417 = sbr.rel (%p415) target = $region52
      $region51: #{tpu_custom_call.1} parent=5 // pred_region
        %s418 = ssub.s32 %s17, 2
        // Predicated region
        $region53: #{tpu_custom_call.1} parent=51 // pred_check
          %p419 = pneg %p156
        $region54: #{tpu_custom_call.1} parent=51 // pred_check_branch
          %421 = sbr.rel (%p419) target = $region56
        $region55: #{tpu_custom_call.1} parent=51 // pred_region
          %s422 = sand.u32 %s141, 1
          %s423 = scalar_lea.sflag [#allocation4], %s422
          %s424 = sand.u32 %s141, 1
          %s425 = smul.addr %s424, 8
          %s426 = scalar_lea.vmem [#allocation5], %s425
          %428 = dma.done %s423, 128
        $region56: #{tpu_custom_call.1} parent=51 // pred_fallthru
          _
      $region52: #{tpu_custom_call.1} parent=5 // pred_fallthru
        _
    $region6: #{tpu_custom_call.1} parent=1 // loop_footer
      %s21 = sadd.s32 1, %s17
    $region7: #{tpu_custom_call.1} parent=1 // loop_footer_branch
      %16 = sbr.rel target = $region3
    $region8: #{tpu_custom_call.1} parent=1 // loop_exit
      _
    %429 = vsyncpa [#allocation3], 1
    %s430 = scalar_lea.sflag [#allocation3], 1
    %431 = vsyncpa %s430, 1
    %432 = vsyncpa [#allocation4], 1
    %s433 = scalar_lea.sflag [#allocation4], 1
    %434 = vsyncpa %s433, 1

</llo_original>
